<compile_context>
chip_gen: v7x
topology: tpu7x:2x2x1
jax: 0.10.0
libtpu: 0.0.40
codegen_flags: <defaults>
</compile_context>

<pallas_src>
import jax
import jax.numpy as jnp
from jax.experimental import pallas as pl
from jax.experimental.pallas import tpu as pltpu

VOCAB_SIZE = 50
EMBEDDING_DIM = 10
CONTEXT_SIZE = 2
HIDDEN = 128
BLOCK_N = 8  # contexts per grid step (sublane-aligned M for MXU + output stores)


def ngram_kernel(idx_ref, emb_ref, w1t_ref, b1_ref, o_ref):
    # idx_ref : SMEM (N_pad*CONTEXT_SIZE,) int32   (scalar-prefetched, flat)
    # emb_ref : VMEM (VOCAB_SIZE, EMBEDDING_DIM)
    # w1t_ref : VMEM (CONTEXT_SIZE, EMBEDDING_DIM, HIDDEN)  == w1.T reshaped
    # b1_ref  : VMEM (1, HIDDEN)
    # o_ref   : VMEM (BLOCK_N, HIDDEN)
    i = pl.program_id(0)

    acc = jnp.zeros((BLOCK_N, HIDDEN), jnp.float32)
    for c in range(CONTEXT_SIZE):
        # Gather BLOCK_N embedding rows for context position c (sublane stack,
        # no lane-axis concat). Clamp: VMEM dynamic slices have no OOB check.
        rows = []
        for b in range(BLOCK_N):
            r = idx_ref[(i * BLOCK_N + b) * CONTEXT_SIZE + c]
            r = jnp.clip(r, 0, VOCAB_SIZE - 1)
            rows.append(emb_ref[pl.ds(r, 1), :])
        x_c = jnp.concatenate(rows, axis=0)                        # (BLOCK_N, E)
        # Per-context partial product against the lane-dense (E, HIDDEN) slab.
        acc = acc + jnp.dot(x_c, w1t_ref[c],
                            preferred_element_type=jnp.float32)    # (BLOCK_N, HIDDEN)

    h = jnp.maximum(acc + b1_ref[...], 0.0)                        # linear1 bias + ReLU

    # log_softmax over the 128 hidden units (dim=1), numerically stable.
    # TODO(synk): the original PyTorch forward never applies linear2 (w2/b2);
    # faithfully reproduced as-is (output is over hidden units, not vocab).
    m = jnp.max(h, axis=-1, keepdims=True)
    s = h - m
    lse = jnp.log(jnp.sum(jnp.exp(s), axis=-1, keepdims=True))
    o_ref[...] = s - lse


def ngram_forward(idx, emb, w1, b1):
    """Runs NGramsLanguageModeler.forward independently on each context row.

    idx: (CONTEXT_SIZE,) or (N, CONTEXT_SIZE) int32. Returns (N, HIDDEN); row n
    equals the PyTorch module's forward on context n (N=1 gives the original
    single-context (1, 128) contract).
    """
    idx = jnp.asarray(idx, jnp.int32)
    if idx.ndim == 1:
        idx = idx[None, :]
    n = idx.shape[0]
    n_pad = pl.cdiv(n, BLOCK_N) * BLOCK_N
    if n_pad != n:
        idx = jnp.concatenate(
            [idx, jnp.zeros((n_pad - n, CONTEXT_SIZE), jnp.int32)], axis=0)
    idx_flat = idx.reshape(-1)  # flat 1-D SMEM operand (avoids 2-D SMEM padding)

    # Host-side layout prep (hoist out of the hot loop when calling repeatedly):
    # lane-dense w1.T (C*E, 128), reshaped so each context slab is a static index.
    w1t = jnp.transpose(w1).reshape(CONTEXT_SIZE, EMBEDDING_DIM, HIDDEN)
    b1r = b1.reshape(1, HIDDEN)

    out = pl.pallas_call(
        ngram_kernel,
        out_shape=jax.ShapeDtypeStruct((n_pad, HIDDEN), jnp.float32),
        grid_spec=pltpu.PrefetchScalarGridSpec(
            num_scalar_prefetch=1,
            grid=(n_pad // BLOCK_N,),
            in_specs=[
                # Constant index_maps: DMA'd once, VMEM-resident across steps.
                pl.BlockSpec((VOCAB_SIZE, EMBEDDING_DIM), lambda i, idx_r: (0, 0)),
                pl.BlockSpec((CONTEXT_SIZE, EMBEDDING_DIM, HIDDEN),
                             lambda i, idx_r: (0, 0, 0)),
                pl.BlockSpec((1, HIDDEN), lambda i, idx_r: (0, 0)),
            ],
            out_specs=pl.BlockSpec((BLOCK_N, HIDDEN), lambda i, idx_r: (i, 0)),
        ),
        compiler_params=pltpu.CompilerParams(
            dimension_semantics=("parallel",)),  # batch axis -> both TCs on v7x
    )(idx_flat, emb, w1t, b1r)
    return out[:n]


def ngram_forward_ref(idx_row, emb, w1, b1):
    x = emb[idx_row].reshape(1, -1)
    h = jnp.maximum(x @ w1.T + b1[None, :], 0.0)
    return jax.nn.log_softmax(h, axis=1)


if __name__ == "__main__":
    key = jax.random.PRNGKey(0)
    k_emb, k_w1, k_b1, k_w2, k_b2, k_idx = jax.random.split(key, 6)

    # Deterministic synthetic parameters (shapes per nn.Module __init__).
    emb = jax.random.normal(k_emb, (VOCAB_SIZE, EMBEDDING_DIM), jnp.float32)
    w1 = jax.random.normal(k_w1, (HIDDEN, CONTEXT_SIZE * EMBEDDING_DIM), jnp.float32) * 0.1
    b1 = jax.random.normal(k_b1, (HIDDEN,), jnp.float32) * 0.1
    # linear2 exists in __init__ but is never used in forward; kept for parity only.
    w2 = jax.random.normal(k_w2, (VOCAB_SIZE, HIDDEN), jnp.float32) * 0.1
    b2 = jax.random.normal(k_b2, (VOCAB_SIZE,), jnp.float32) * 0.1

    # A small batch of contexts (each row is one independent forward pass).
    n_ctx = 16
    idx = jax.random.randint(k_idx, (n_ctx, CONTEXT_SIZE), 0, VOCAB_SIZE, dtype=jnp.int32)

    out = jax.block_until_ready(ngram_forward(idx, emb, w1, b1))
    assert out.shape == (n_ctx, HIDDEN) and out.dtype == jnp.float32
    ref = jnp.concatenate(
        [ngram_forward_ref(idx[i], emb, w1, b1) for i in range(n_ctx)], axis=0)
    assert jnp.allclose(out, ref, atol=1e-5, rtol=1e-5)

    # Original single-context contract: (CONTEXT_SIZE,) -> (1, HIDDEN).
    out1 = jax.block_until_ready(ngram_forward(idx[0], emb, w1, b1))
    assert out1.shape == (1, HIDDEN)
    assert jnp.allclose(out1, ref[:1], atol=1e-5, rtol=1e-5)

    print("KERNEL_OK")
</pallas_src>

<mosaic_0001>
module attributes {stable_mosaic.version = 11 : i64} {
  func.func @ngram_kernel(%arg0: i32, %arg1: memref<32xi32, #tpu.memory_space<smem>>, %arg2: memref<50x10xf32, #tpu.memory_space<vmem>>, %arg3: memref<2x10x128xf32, #tpu.memory_space<vmem>>, %arg4: memref<1x128xf32, #tpu.memory_space<vmem>>, %arg5: memref<8x128xf32, #tpu.memory_space<vmem>>) attributes {dimension_semantics = [#tpu.dimension_semantics<parallel>], iteration_bounds = array<i64: 2>, scalar_prefetch = 1 : i64, scratch_operands = 0 : i64, tpu.core_type = #tpu.core_type<tc>, window_params = [{pipeline_mode = #tpu.pipeline_mode<synchronous>, transform_indices = @transform_0, window_bounds = array<i64: 50, 10>}, {pipeline_mode = #tpu.pipeline_mode<synchronous>, transform_indices = @transform_1, window_bounds = array<i64: 2, 10, 128>}, {pipeline_mode = #tpu.pipeline_mode<synchronous>, transform_indices = @transform_2, window_bounds = array<i64: 1, 128>}, {transform_indices = @transform_3, window_bounds = array<i64: 8, 128>}]} {
    %cst = arith.constant 0.000000e+00 : f32
    %0 = vector.broadcast %cst : f32 to vector<8x128xf32>
    %c8_i32 = arith.constant 8 : i32
    %1 = arith.muli %arg0, %c8_i32 : i32
    %c0_i32 = arith.constant 0 : i32
    %2 = arith.addi %1, %c0_i32 : i32
    %c2_i32 = arith.constant 2 : i32
    %3 = arith.muli %2, %c2_i32 : i32
    %c0_i32_0 = arith.constant 0 : i32
    %4 = arith.addi %3, %c0_i32_0 : i32
    %5 = arith.index_cast %4 : i32 to index
    %6 = memref.load %arg1[%5] : memref<32xi32, #tpu.memory_space<smem>>
    %c0_i32_1 = arith.constant 0 : i32
    %c49_i32 = arith.constant 49 : i32
    %7 = arith.maxsi %c0_i32_1, %6 : i32
    %8 = arith.minsi %c49_i32, %7 : i32
    %9 = arith.index_cast %8 : i32 to index
    %c0 = arith.constant 0 : index
    %10 = vector.load %arg2[%9, %c0] : memref<50x10xf32, #tpu.memory_space<vmem>>, vector<1x10xf32>
    %c8_i32_2 = arith.constant 8 : i32
    %11 = arith.muli %arg0, %c8_i32_2 : i32
    %c1_i32 = arith.constant 1 : i32
    %12 = arith.addi %11, %c1_i32 : i32
    %c2_i32_3 = arith.constant 2 : i32
    %13 = arith.muli %12, %c2_i32_3 : i32
    %c0_i32_4 = arith.constant 0 : i32
    %14 = arith.addi %13, %c0_i32_4 : i32
    %15 = arith.index_cast %14 : i32 to index
    %16 = memref.load %arg1[%15] : memref<32xi32, #tpu.memory_space<smem>>
    %c0_i32_5 = arith.constant 0 : i32
    %c49_i32_6 = arith.constant 49 : i32
    %17 = arith.maxsi %c0_i32_5, %16 : i32
    %18 = arith.minsi %c49_i32_6, %17 : i32
    %19 = arith.index_cast %18 : i32 to index
    %c0_7 = arith.constant 0 : index
    %20 = vector.load %arg2[%19, %c0_7] : memref<50x10xf32, #tpu.memory_space<vmem>>, vector<1x10xf32>
    %c8_i32_8 = arith.constant 8 : i32
    %21 = arith.muli %arg0, %c8_i32_8 : i32
    %c2_i32_9 = arith.constant 2 : i32
    %22 = arith.addi %21, %c2_i32_9 : i32
    %c2_i32_10 = arith.constant 2 : i32
    %23 = arith.muli %22, %c2_i32_10 : i32
    %c0_i32_11 = arith.constant 0 : i32
    %24 = arith.addi %23, %c0_i32_11 : i32
    %25 = arith.index_cast %24 : i32 to index
    %26 = memref.load %arg1[%25] : memref<32xi32, #tpu.memory_space<smem>>
    %c0_i32_12 = arith.constant 0 : i32
    %c49_i32_13 = arith.constant 49 : i32
    %27 = arith.maxsi %c0_i32_12, %26 : i32
    %28 = arith.minsi %c49_i32_13, %27 : i32
    %29 = arith.index_cast %28 : i32 to index
    %c0_14 = arith.constant 0 : index
    %30 = vector.load %arg2[%29, %c0_14] : memref<50x10xf32, #tpu.memory_space<vmem>>, vector<1x10xf32>
    %c8_i32_15 = arith.constant 8 : i32
    %31 = arith.muli %arg0, %c8_i32_15 : i32
    %c3_i32 = arith.constant 3 : i32
    %32 = arith.addi %31, %c3_i32 : i32
    %c2_i32_16 = arith.constant 2 : i32
    %33 = arith.muli %32, %c2_i32_16 : i32
    %c0_i32_17 = arith.constant 0 : i32
    %34 = arith.addi %33, %c0_i32_17 : i32
    %35 = arith.index_cast %34 : i32 to index
    %36 = memref.load %arg1[%35] : memref<32xi32, #tpu.memory_space<smem>>
    %c0_i32_18 = arith.constant 0 : i32
    %c49_i32_19 = arith.constant 49 : i32
    %37 = arith.maxsi %c0_i32_18, %36 : i32
    %38 = arith.minsi %c49_i32_19, %37 : i32
    %39 = arith.index_cast %38 : i32 to index
    %c0_20 = arith.constant 0 : index
    %40 = vector.load %arg2[%39, %c0_20] : memref<50x10xf32, #tpu.memory_space<vmem>>, vector<1x10xf32>
    %c8_i32_21 = arith.constant 8 : i32
    %41 = arith.muli %arg0, %c8_i32_21 : i32
    %c4_i32 = arith.constant 4 : i32
    %42 = arith.addi %41, %c4_i32 : i32
    %c2_i32_22 = arith.constant 2 : i32
    %43 = arith.muli %42, %c2_i32_22 : i32
    %c0_i32_23 = arith.constant 0 : i32
    %44 = arith.addi %43, %c0_i32_23 : i32
    %45 = arith.index_cast %44 : i32 to index
    %46 = memref.load %arg1[%45] : memref<32xi32, #tpu.memory_space<smem>>
    %c0_i32_24 = arith.constant 0 : i32
    %c49_i32_25 = arith.constant 49 : i32
    %47 = arith.maxsi %c0_i32_24, %46 : i32
    %48 = arith.minsi %c49_i32_25, %47 : i32
    %49 = arith.index_cast %48 : i32 to index
    %c0_26 = arith.constant 0 : index
    %50 = vector.load %arg2[%49, %c0_26] : memref<50x10xf32, #tpu.memory_space<vmem>>, vector<1x10xf32>
    %c8_i32_27 = arith.constant 8 : i32
    %51 = arith.muli %arg0, %c8_i32_27 : i32
    %c5_i32 = arith.constant 5 : i32
    %52 = arith.addi %51, %c5_i32 : i32
    %c2_i32_28 = arith.constant 2 : i32
    %53 = arith.muli %52, %c2_i32_28 : i32
    %c0_i32_29 = arith.constant 0 : i32
    %54 = arith.addi %53, %c0_i32_29 : i32
    %55 = arith.index_cast %54 : i32 to index
    %56 = memref.load %arg1[%55] : memref<32xi32, #tpu.memory_space<smem>>
    %c0_i32_30 = arith.constant 0 : i32
    %c49_i32_31 = arith.constant 49 : i32
    %57 = arith.maxsi %c0_i32_30, %56 : i32
    %58 = arith.minsi %c49_i32_31, %57 : i32
    %59 = arith.index_cast %58 : i32 to index
    %c0_32 = arith.constant 0 : index
    %60 = vector.load %arg2[%59, %c0_32] : memref<50x10xf32, #tpu.memory_space<vmem>>, vector<1x10xf32>
    %c8_i32_33 = arith.constant 8 : i32
    %61 = arith.muli %arg0, %c8_i32_33 : i32
    %c6_i32 = arith.constant 6 : i32
    %62 = arith.addi %61, %c6_i32 : i32
    %c2_i32_34 = arith.constant 2 : i32
    %63 = arith.muli %62, %c2_i32_34 : i32
    %c0_i32_35 = arith.constant 0 : i32
    %64 = arith.addi %63, %c0_i32_35 : i32
    %65 = arith.index_cast %64 : i32 to index
    %66 = memref.load %arg1[%65] : memref<32xi32, #tpu.memory_space<smem>>
    %c0_i32_36 = arith.constant 0 : i32
    %c49_i32_37 = arith.constant 49 : i32
    %67 = arith.maxsi %c0_i32_36, %66 : i32
    %68 = arith.minsi %c49_i32_37, %67 : i32
    %69 = arith.index_cast %68 : i32 to index
    %c0_38 = arith.constant 0 : index
    %70 = vector.load %arg2[%69, %c0_38] : memref<50x10xf32, #tpu.memory_space<vmem>>, vector<1x10xf32>
    %c8_i32_39 = arith.constant 8 : i32
    %71 = arith.muli %arg0, %c8_i32_39 : i32
    %c7_i32 = arith.constant 7 : i32
    %72 = arith.addi %71, %c7_i32 : i32
    %c2_i32_40 = arith.constant 2 : i32
    %73 = arith.muli %72, %c2_i32_40 : i32
    %c0_i32_41 = arith.constant 0 : i32
    %74 = arith.addi %73, %c0_i32_41 : i32
    %75 = arith.index_cast %74 : i32 to index
    %76 = memref.load %arg1[%75] : memref<32xi32, #tpu.memory_space<smem>>
    %c0_i32_42 = arith.constant 0 : i32
    %c49_i32_43 = arith.constant 49 : i32
    %77 = arith.maxsi %c0_i32_42, %76 : i32
    %78 = arith.minsi %c49_i32_43, %77 : i32
    %79 = arith.index_cast %78 : i32 to index
    %c0_44 = arith.constant 0 : index
    %80 = vector.load %arg2[%79, %c0_44] : memref<50x10xf32, #tpu.memory_space<vmem>>, vector<1x10xf32>
    %81 = tpu.concatenate %10, %20, %30, %40, %50, %60, %70, %80 in 0 : vector<1x10xf32>, vector<1x10xf32>, vector<1x10xf32>, vector<1x10xf32>, vector<1x10xf32>, vector<1x10xf32>, vector<1x10xf32>, vector<1x10xf32> -> vector<8x10xf32>
    %c0_45 = arith.constant 0 : index
    %c0_46 = arith.constant 0 : index
    %c0_47 = arith.constant 0 : index
    %82 = vector.load %arg3[%c0_45, %c0_46, %c0_47] : memref<2x10x128xf32, #tpu.memory_space<vmem>>, vector<1x10x128xf32>
    %83 = vector.shape_cast %82 : vector<1x10x128xf32> to vector<10x128xf32>
    %cst_48 = arith.constant dense<0.000000e+00> : vector<8x128xf32>
    %84 = tpu.matmul %81, %83, %cst_48 {dimension_numbers = #tpu.dot_dimension_numbers<[1], [0], [0], [1], [0, 0, 1, 1], [], []>} : vector<8x10xf32>, vector<10x128xf32>, vector<8x128xf32> -> vector<8x128xf32>
    %85 = arith.addf %0, %84 : vector<8x128xf32>
    %c8_i32_49 = arith.constant 8 : i32
    %86 = arith.muli %arg0, %c8_i32_49 : i32
    %c0_i32_50 = arith.constant 0 : i32
    %87 = arith.addi %86, %c0_i32_50 : i32
    %c2_i32_51 = arith.constant 2 : i32
    %88 = arith.muli %87, %c2_i32_51 : i32
    %c1_i32_52 = arith.constant 1 : i32
    %89 = arith.addi %88, %c1_i32_52 : i32
    %90 = arith.index_cast %89 : i32 to index
    %91 = memref.load %arg1[%90] : memref<32xi32, #tpu.memory_space<smem>>
    %c0_i32_53 = arith.constant 0 : i32
    %c49_i32_54 = arith.constant 49 : i32
    %92 = arith.maxsi %c0_i32_53, %91 : i32
    %93 = arith.minsi %c49_i32_54, %92 : i32
    %94 = arith.index_cast %93 : i32 to index
    %c0_55 = arith.constant 0 : index
    %95 = vector.load %arg2[%94, %c0_55] : memref<50x10xf32, #tpu.memory_space<vmem>>, vector<1x10xf32>
    %c8_i32_56 = arith.constant 8 : i32
    %96 = arith.muli %arg0, %c8_i32_56 : i32
    %c1_i32_57 = arith.constant 1 : i32
    %97 = arith.addi %96, %c1_i32_57 : i32
    %c2_i32_58 = arith.constant 2 : i32
    %98 = arith.muli %97, %c2_i32_58 : i32
    %c1_i32_59 = arith.constant 1 : i32
    %99 = arith.addi %98, %c1_i32_59 : i32
    %100 = arith.index_cast %99 : i32 to index
    %101 = memref.load %arg1[%100] : memref<32xi32, #tpu.memory_space<smem>>
    %c0_i32_60 = arith.constant 0 : i32
    %c49_i32_61 = arith.constant 49 : i32
    %102 = arith.maxsi %c0_i32_60, %101 : i32
    %103 = arith.minsi %c49_i32_61, %102 : i32
    %104 = arith.index_cast %103 : i32 to index
    %c0_62 = arith.constant 0 : index
    %105 = vector.load %arg2[%104, %c0_62] : memref<50x10xf32, #tpu.memory_space<vmem>>, vector<1x10xf32>
    %c8_i32_63 = arith.constant 8 : i32
    %106 = arith.muli %arg0, %c8_i32_63 : i32
    %c2_i32_64 = arith.constant 2 : i32
    %107 = arith.addi %106, %c2_i32_64 : i32
    %c2_i32_65 = arith.constant 2 : i32
    %108 = arith.muli %107, %c2_i32_65 : i32
    %c1_i32_66 = arith.constant 1 : i32
    %109 = arith.addi %108, %c1_i32_66 : i32
    %110 = arith.index_cast %109 : i32 to index
    %111 = memref.load %arg1[%110] : memref<32xi32, #tpu.memory_space<smem>>
    %c0_i32_67 = arith.constant 0 : i32
    %c49_i32_68 = arith.constant 49 : i32
    %112 = arith.maxsi %c0_i32_67, %111 : i32
    %113 = arith.minsi %c49_i32_68, %112 : i32
    %114 = arith.index_cast %113 : i32 to index
    %c0_69 = arith.constant 0 : index
    %115 = vector.load %arg2[%114, %c0_69] : memref<50x10xf32, #tpu.memory_space<vmem>>, vector<1x10xf32>
    %c8_i32_70 = arith.constant 8 : i32
    %116 = arith.muli %arg0, %c8_i32_70 : i32
    %c3_i32_71 = arith.constant 3 : i32
    %117 = arith.addi %116, %c3_i32_71 : i32
    %c2_i32_72 = arith.constant 2 : i32
    %118 = arith.muli %117, %c2_i32_72 : i32
    %c1_i32_73 = arith.constant 1 : i32
    %119 = arith.addi %118, %c1_i32_73 : i32
    %120 = arith.index_cast %119 : i32 to index
    %121 = memref.load %arg1[%120] : memref<32xi32, #tpu.memory_space<smem>>
    %c0_i32_74 = arith.constant 0 : i32
    %c49_i32_75 = arith.constant 49 : i32
    %122 = arith.maxsi %c0_i32_74, %121 : i32
    %123 = arith.minsi %c49_i32_75, %122 : i32
    %124 = arith.index_cast %123 : i32 to index
    %c0_76 = arith.constant 0 : index
    %125 = vector.load %arg2[%124, %c0_76] : memref<50x10xf32, #tpu.memory_space<vmem>>, vector<1x10xf32>
    %c8_i32_77 = arith.constant 8 : i32
    %126 = arith.muli %arg0, %c8_i32_77 : i32
    %c4_i32_78 = arith.constant 4 : i32
    %127 = arith.addi %126, %c4_i32_78 : i32
    %c2_i32_79 = arith.constant 2 : i32
    %128 = arith.muli %127, %c2_i32_79 : i32
    %c1_i32_80 = arith.constant 1 : i32
    %129 = arith.addi %128, %c1_i32_80 : i32
    %130 = arith.index_cast %129 : i32 to index
    %131 = memref.load %arg1[%130] : memref<32xi32, #tpu.memory_space<smem>>
    %c0_i32_81 = arith.constant 0 : i32
    %c49_i32_82 = arith.constant 49 : i32
    %132 = arith.maxsi %c0_i32_81, %131 : i32
    %133 = arith.minsi %c49_i32_82, %132 : i32
    %134 = arith.index_cast %133 : i32 to index
    %c0_83 = arith.constant 0 : index
    %135 = vector.load %arg2[%134, %c0_83] : memref<50x10xf32, #tpu.memory_space<vmem>>, vector<1x10xf32>
    %c8_i32_84 = arith.constant 8 : i32
    %136 = arith.muli %arg0, %c8_i32_84 : i32
    %c5_i32_85 = arith.constant 5 : i32
    %137 = arith.addi %136, %c5_i32_85 : i32
    %c2_i32_86 = arith.constant 2 : i32
    %138 = arith.muli %137, %c2_i32_86 : i32
    %c1_i32_87 = arith.constant 1 : i32
    %139 = arith.addi %138, %c1_i32_87 : i32
    %140 = arith.index_cast %139 : i32 to index
    %141 = memref.load %arg1[%140] : memref<32xi32, #tpu.memory_space<smem>>
    %c0_i32_88 = arith.constant 0 : i32
    %c49_i32_89 = arith.constant 49 : i32
    %142 = arith.maxsi %c0_i32_88, %141 : i32
    %143 = arith.minsi %c49_i32_89, %142 : i32
    %144 = arith.index_cast %143 : i32 to index
    %c0_90 = arith.constant 0 : index
    %145 = vector.load %arg2[%144, %c0_90] : memref<50x10xf32, #tpu.memory_space<vmem>>, vector<1x10xf32>
    %c8_i32_91 = arith.constant 8 : i32
    %146 = arith.muli %arg0, %c8_i32_91 : i32
    %c6_i32_92 = arith.constant 6 : i32
    %147 = arith.addi %146, %c6_i32_92 : i32
    %c2_i32_93 = arith.constant 2 : i32
    %148 = arith.muli %147, %c2_i32_93 : i32
    %c1_i32_94 = arith.constant 1 : i32
    %149 = arith.addi %148, %c1_i32_94 : i32
    %150 = arith.index_cast %149 : i32 to index
    %151 = memref.load %arg1[%150] : memref<32xi32, #tpu.memory_space<smem>>
    %c0_i32_95 = arith.constant 0 : i32
    %c49_i32_96 = arith.constant 49 : i32
    %152 = arith.maxsi %c0_i32_95, %151 : i32
    %153 = arith.minsi %c49_i32_96, %152 : i32
    %154 = arith.index_cast %153 : i32 to index
    %c0_97 = arith.constant 0 : index
    %155 = vector.load %arg2[%154, %c0_97] : memref<50x10xf32, #tpu.memory_space<vmem>>, vector<1x10xf32>
    %c8_i32_98 = arith.constant 8 : i32
    %156 = arith.muli %arg0, %c8_i32_98 : i32
    %c7_i32_99 = arith.constant 7 : i32
    %157 = arith.addi %156, %c7_i32_99 : i32
    %c2_i32_100 = arith.constant 2 : i32
    %158 = arith.muli %157, %c2_i32_100 : i32
    %c1_i32_101 = arith.constant 1 : i32
    %159 = arith.addi %158, %c1_i32_101 : i32
    %160 = arith.index_cast %159 : i32 to index
    %161 = memref.load %arg1[%160] : memref<32xi32, #tpu.memory_space<smem>>
    %c0_i32_102 = arith.constant 0 : i32
    %c49_i32_103 = arith.constant 49 : i32
    %162 = arith.maxsi %c0_i32_102, %161 : i32
    %163 = arith.minsi %c49_i32_103, %162 : i32
    %164 = arith.index_cast %163 : i32 to index
    %c0_104 = arith.constant 0 : index
    %165 = vector.load %arg2[%164, %c0_104] : memref<50x10xf32, #tpu.memory_space<vmem>>, vector<1x10xf32>
    %166 = tpu.concatenate %95, %105, %115, %125, %135, %145, %155, %165 in 0 : vector<1x10xf32>, vector<1x10xf32>, vector<1x10xf32>, vector<1x10xf32>, vector<1x10xf32>, vector<1x10xf32>, vector<1x10xf32>, vector<1x10xf32> -> vector<8x10xf32>
    %c1 = arith.constant 1 : index
    %c0_105 = arith.constant 0 : index
    %c0_106 = arith.constant 0 : index
    %167 = vector.load %arg3[%c1, %c0_105, %c0_106] : memref<2x10x128xf32, #tpu.memory_space<vmem>>, vector<1x10x128xf32>
    %168 = vector.shape_cast %167 : vector<1x10x128xf32> to vector<10x128xf32>
    %cst_107 = arith.constant dense<0.000000e+00> : vector<8x128xf32>
    %169 = tpu.matmul %166, %168, %cst_107 {dimension_numbers = #tpu.dot_dimension_numbers<[1], [0], [0], [1], [0, 0, 1, 1], [], []>} : vector<8x10xf32>, vector<10x128xf32>, vector<8x128xf32> -> vector<8x128xf32>
    %170 = arith.addf %85, %169 : vector<8x128xf32>
    %c0_108 = arith.constant 0 : index
    %c0_109 = arith.constant 0 : index
    %171 = vector.load %arg4[%c0_108, %c0_109] : memref<1x128xf32, #tpu.memory_space<vmem>>, vector<1x128xf32>
    %172 = vector.broadcast %171 : vector<1x128xf32> to vector<8x128xf32>
    %173 = arith.addf %170, %172 : vector<8x128xf32>
    %cst_110 = arith.constant 0.000000e+00 : f32
    %174 = vector.broadcast %cst_110 : f32 to vector<8x128xf32>
    %175 = arith.maximumf %173, %174 : vector<8x128xf32>
    %cst_111 = arith.constant dense<0xFF800000> : vector<8xf32>
    %176 = vector.multi_reduction <maximumf>, %175, %cst_111 [1] : vector<8x128xf32> to vector<8xf32>
    %177 = vector.shape_cast %176 : vector<8xf32> to vector<8x1xf32>
    %178 = vector.broadcast %177 : vector<8x1xf32> to vector<8x128xf32>
    %179 = arith.subf %175, %178 : vector<8x128xf32>
    %180 = math.exp %179 : vector<8x128xf32>
    %cst_112 = arith.constant dense<0.000000e+00> : vector<8xf32>
    %181 = vector.multi_reduction <add>, %180, %cst_112 [1] : vector<8x128xf32> to vector<8xf32>
    %182 = vector.shape_cast %181 : vector<8xf32> to vector<8x1xf32>
    %183 = math.log %182 : vector<8x1xf32>
    %184 = vector.broadcast %183 : vector<8x1xf32> to vector<8x128xf32>
    %185 = arith.subf %179, %184 : vector<8x128xf32>
    %c0_113 = arith.constant 0 : index
    %c0_114 = arith.constant 0 : index
    %186 = vector.load %arg5[%c0_113, %c0_114] : memref<8x128xf32, #tpu.memory_space<vmem>>, vector<8x128xf32>
    tpu.vector_store %arg5[%c0_113, %c0_114], %185 {strides = array<i32>} : memref<8x128xf32, #tpu.memory_space<vmem>>, vector<8x128xf32>,
    return
  }
  func.func @transform_0(%arg0: i32, %arg1: memref<32xi32, #tpu.memory_space<smem>>) -> (i32, i32) {
    %c0_i32 = arith.constant 0 : i32
    %c0_i32_0 = arith.constant 0 : i32
    %c0_i32_1 = arith.constant 0 : i32
    return %c0_i32, %c0_i32_0 : i32, i32
  }
  func.func @transform_1(%arg0: i32, %arg1: memref<32xi32, #tpu.memory_space<smem>>) -> (i32, i32, i32) {
    %c0_i32 = arith.constant 0 : i32
    %c0_i32_0 = arith.constant 0 : i32
    %c0_i32_1 = arith.constant 0 : i32
    %c0_i32_2 = arith.constant 0 : i32
    return %c0_i32, %c0_i32_0, %c0_i32_1 : i32, i32, i32
  }
  func.func @transform_2(%arg0: i32, %arg1: memref<32xi32, #tpu.memory_space<smem>>) -> (i32, i32) {
    %c0_i32 = arith.constant 0 : i32
    %c0_i32_0 = arith.constant 0 : i32
    %c0_i32_1 = arith.constant 0 : i32
    return %c0_i32, %c0_i32_0 : i32, i32
  }
  func.func @transform_3(%arg0: i32, %arg1: memref<32xi32, #tpu.memory_space<smem>>) -> (i32, i32) {
    %c0_i32 = arith.constant 0 : i32
    %c0_i32_0 = arith.constant 0 : i32
    return %arg0, %c0_i32 : i32, i32
  }
}

</mosaic_0001>

<llo_original>
// kernel: tpu_custom_call.1
$region0: #{tpu_custom_call.1}
  #allocation0 [shape = 'u32[]', space=smem, size = 0x4, offset = 0x4, fixed_abs, tag = 'smem constant byte address 0x4 - core index']
  #allocation1 [shape = 'u32[144,128]{1,0:T(1,128)}', space=vmem, size = 0x12000, scoped, tag = 'internal scratch']
  #allocation2 [shape = 's32[1]{0}', space=sflag, size = 0x4, scoped, tag = 'scoped memory for tpu_custom_call.1']
  #allocation3 [shape = 'u8[512]{0}', space=smem, size = 0x200, scoped, tag = 'prefetched SMEM operand 0']
  %s0 = inlined_call_operand.vmem [shape: s32[32], index: 0, kind: input, shape index: {}]
  %s1 = inlined_call_operand.vmem [shape: f32[50,10], index: 1, kind: input, shape index: {}]
  %s2 = inlined_call_operand.vmem [shape: f32[2,10,128], index: 2, kind: input, shape index: {}]
  %s3 = inlined_call_operand.vmem [shape: f32[1,128], index: 3, kind: input, shape index: {}]
  %s4 = inlined_call_operand.hbm [shape: f32[16,128], index: 4, kind: output, shape index: {}]
  %s5 = sld [smem:[#allocation0]]
  $region45: #{tpu_custom_call.1} parent=0
    _
  %s7 = ssub.s32 1, %s5
  %s8 = scalar_select 0, %s7, %s5
  %s9 = sshll.u32 %s0, 4
  %s10 = int_to_ptr.vmem [resolvable:$true] %s9
  %12 = dma.vmem_to_smem %s10, 16, [#allocation3], [#allocation2]
  %13 = dma.done [#allocation2], 16
  %14 = sfence
  $region1: #{tpu_custom_call.1} parent=0
    #allocation4 [shape = 'u8[8192]{0}', space=vmem, size = 0x2000, scoped, tag = 'output window, operand 0']
    #allocation5 [shape = 's32[2]{0}', space=sflag, size = 0x8, scoped, tag = 'scoped memory for tpu_custom_call.1']
    %15 = vsyncpa [#allocation5], 0
    %s16 = scalar_lea.sflag [#allocation5], 1
    %17 = vsyncpa %s16, 0
    loop: start=0, step=1, limit=4
    $region2: #{tpu_custom_call.1} parent=1 // loop_pre_header
      _
    $region3: #{tpu_custom_call.1} parent=1 // loop_header
      %s19 = sphi 0, %s23
      %p20 = scmp.ge.s32.totalorder %s19, 4
      %s27 = sphi 0, %s27
      %s29 = sphi 0, %s27
      %s30 = sphi 0, %s29
      %s44 = sphi 0, %s30
      %s48 = sphi 0, %s48
      %s50 = sphi 0, %s48
      %s51 = sphi 0, %s50
      %s65 = sphi 0, %s51
      %s69 = sphi 0, %s69
      %s71 = sphi 0, %s69
      %s72 = sphi 0, %s71
      %s86 = sphi 0, %s72
      %s92 = sphi 0, %s94
      %s95 = sphi 0, %s92
      %s96 = sphi 0, %s95
      %s112 = sphi 0, %s96
    $region4: #{tpu_custom_call.1} parent=1 // loop_header_branch
      %22 = sbr.rel (%p20) target = $region8
    $region5: #{tpu_custom_call.1} parent=1 // loop_body
      %s24 = ssub.s32 %s19, 1
      %s25 = ssub.s32 %s19, 2
      %s26 = sadd.s32 %s19, 1
      %s28 = sadd.s32 %s27, 1
      %p31 = scmp.eq.s32.totalorder %s19, 1
      %p32 = scmp.ne.s32.totalorder %s27, %s29
      %p33 = scmp.eq.s32.totalorder %s19, 0
      %p34 = por %p32, %p33
      %p35 = scmp.ne.s32.totalorder %s27, %s29
      %p36 = scmp.eq.s32.totalorder %s24, 1
      %p37 = por %p35, %p36
      %p38 = scmp.ne.s32.totalorder %s29, %s30
      %p39 = scmp.eq.s32.totalorder %s24, 0
      %p40 = por %p38, %p39
      %p41 = scmp.ne.s32.totalorder %s29, %s30
      %p42 = scmp.eq.s32.totalorder %s25, 1
      %p43 = por %p41, %p42
      %p45 = scmp.ne.s32.totalorder %s30, %s44
      %p46 = scmp.eq.s32.totalorder %s25, 0
      %p47 = por %p45, %p46
      %s49 = sadd.s32 %s48, 1
      %p52 = scmp.eq.s32.totalorder %s19, 1
      %p53 = scmp.ne.s32.totalorder %s48, %s50
      %p54 = scmp.eq.s32.totalorder %s19, 0
      %p55 = por %p53, %p54
      %p56 = scmp.ne.s32.totalorder %s48, %s50
      %p57 = scmp.eq.s32.totalorder %s24, 1
      %p58 = por %p56, %p57
      %p59 = scmp.ne.s32.totalorder %s50, %s51
      %p60 = scmp.eq.s32.totalorder %s24, 0
      %p61 = por %p59, %p60
      %p62 = scmp.ne.s32.totalorder %s50, %s51
      %p63 = scmp.eq.s32.totalorder %s25, 1
      %p64 = por %p62, %p63
      %p66 = scmp.ne.s32.totalorder %s51, %s65
      %p67 = scmp.eq.s32.totalorder %s25, 0
      %p68 = por %p66, %p67
      %s70 = sadd.s32 %s69, 1
      %p73 = scmp.eq.s32.totalorder %s19, 1
      %p74 = scmp.ne.s32.totalorder %s69, %s71
      %p75 = scmp.eq.s32.totalorder %s19, 0
      %p76 = por %p74, %p75
      %p77 = scmp.ne.s32.totalorder %s69, %s71
      %p78 = scmp.eq.s32.totalorder %s24, 1
      %p79 = por %p77, %p78
      %p80 = scmp.ne.s32.totalorder %s71, %s72
      %p81 = scmp.eq.s32.totalorder %s24, 0
      %p82 = por %p80, %p81
      %p83 = scmp.ne.s32.totalorder %s71, %s72
      %p84 = scmp.eq.s32.totalorder %s25, 1
      %p85 = por %p83, %p84
      %p87 = scmp.ne.s32.totalorder %s72, %s86
      %p88 = scmp.eq.s32.totalorder %s25, 0
      %p89 = por %p87, %p88
      %s90 = ssub.s32 %s19, %s26
      %p91 = scmp.eq.s32.totalorder %s90, 0
      %s93 = sadd.s32 %s92, 1
      %s94 = scalar_select %p91, %s92, %s93
      %p97 = pneg %p91
      %p98 = scmp.eq.s32.totalorder %s19, 1
      %p99 = por %p97, %p98
      %p100 = scmp.ne.s32.totalorder %s92, %s95
      %p101 = scmp.eq.s32.totalorder %s19, 0
      %p102 = por %p100, %p101
      %p103 = scmp.ne.s32.totalorder %s92, %s95
      %p104 = scmp.eq.s32.totalorder %s24, 1
      %p105 = por %p103, %p104
      %p106 = scmp.ne.s32.totalorder %s95, %s96
      %p107 = scmp.eq.s32.totalorder %s24, 0
      %p108 = por %p106, %p107
      %p109 = scmp.ne.s32.totalorder %s95, %s96
      %p110 = scmp.eq.s32.totalorder %s25, 1
      %p111 = por %p109, %p110
      %p113 = scmp.ne.s32.totalorder %s96, %s112
      %p114 = scmp.eq.s32.totalorder %s25, 0
      %p115 = por %p113, %p114
      %p116 = scmp.le.s32.totalorder 1, %s19
      %p117 = scmp.lt.s32.totalorder %s19, 3
      %p118 = pnand %p116, %p117
      %p119 = pneg %p118
      // Predicated region
      $region9: #{tpu_custom_call.1} parent=5 // pred_check
        _
      $region10: #{tpu_custom_call.1} parent=5 // pred_check_branch
        %121 = sbr.rel (%p118) target = $region12
      $region11: #{tpu_custom_call.1} parent=5 // pred_region
        %s122 = ssub.s32 %s19, 1
        // Predicated region
        $region13: #{tpu_custom_call.1} parent=11 // pred_check
          %p123 = pneg %p40
        $region14: #{tpu_custom_call.1} parent=11 // pred_check_branch
          %125 = sbr.rel (%p123) target = $region16
        $region15: #{tpu_custom_call.1} parent=11 // pred_region
          _
        $region16: #{tpu_custom_call.1} parent=11 // pred_fallthru
          _
        // Predicated region
        $region17: #{tpu_custom_call.1} parent=11 // pred_check
          %p126 = pneg %p61
        $region18: #{tpu_custom_call.1} parent=11 // pred_check_branch
          %128 = sbr.rel (%p126) target = $region20
        $region19: #{tpu_custom_call.1} parent=11 // pred_region
          _
        $region20: #{tpu_custom_call.1} parent=11 // pred_fallthru
          _
        // Predicated region
        $region21: #{tpu_custom_call.1} parent=11 // pred_check
          %p129 = pneg %p82
        $region22: #{tpu_custom_call.1} parent=11 // pred_check_branch
          %131 = sbr.rel (%p129) target = $region24
        $region23: #{tpu_custom_call.1} parent=11 // pred_region
          _
        $region24: #{tpu_custom_call.1} parent=11 // pred_fallthru
          _
      $region12: #{tpu_custom_call.1} parent=5 // pred_fallthru
        _
      %p132 = scmp.lt.s32.totalorder %s19, 2
      // Predicated region
      $region25: #{tpu_custom_call.1} parent=5 // pred_check
        %p133 = pneg %p132
      $region26: #{tpu_custom_call.1} parent=5 // pred_check_branch
        %135 = sbr.rel (%p133) target = $region28
      $region27: #{tpu_custom_call.1} parent=5 // pred_region
        _
      $region28: #{tpu_custom_call.1} parent=5 // pred_fallthru
        _
      %p136 = scmp.le.s32.totalorder 1, %s19
      %p137 = scmp.lt.s32.totalorder %s19, 3
      %p138 = pnand %p136, %p137
      %p139 = pneg %p138
      // Predicated region
      $region29: #{tpu_custom_call.1} parent=5 // pred_check
        _
      $region30: #{tpu_custom_call.1} parent=5 // pred_check_branch
        %141 = sbr.rel (%p138) target = $region32
      $region31: #{tpu_custom_call.1} parent=5 // pred_region
        %s142 = ssub.s32 %s19, 1
        %p143 = pneg %p40
        %p144 = pneg %p37
        %p145 = pneg %p61
        %p146 = pneg %p58
        %p147 = pneg %p82
        %p148 = pneg %p79
        %p149 = pneg %p108
        %p150 = pneg %p105
        %s151 = sand.u32 %s95, 1
        %s152 = scalar_lea.sflag [#allocation5], %s151
        %s153 = sand.u32 %s95, 1
        %s154 = smul.addr %s153, 8
        %s155 = scalar_lea.vmem [#allocation4], %s154
        %s156 = smul.u32 %s24, 16
        %s157 = sld [smem:[#allocation3 + %s156]]
        %p158 = scmp.gt.s32.totalorder %s157, 0
        %s159 = scalar_select %p158, %s157, 0
        %p160 = scmp.lt.s32.totalorder %s159, 49
        %s161 = scalar_select %p160, %s159, 49
        %s162 = scalar_lea.vmem %s1, %s161
        %v163 = vld [vmem:[%s162] sm:$0x1]
        %s164 = smul.u32 %s24, 8
        %s165 = sadd.s32 %s164, 1
        %s166 = smul.u32 %s165, 2
        %s167 = sld [smem:[#allocation3 + %s166]]
        %p168 = scmp.gt.s32.totalorder %s167, 0
        %s169 = scalar_select %p168, %s167, 0
        %p170 = scmp.lt.s32.totalorder %s169, 49
        %s171 = scalar_select %p170, %s169, 49
        %s172 = scalar_lea.vmem %s1, %s171
        %v173 = vld [vmem:[%s172] sm:$0x1]
        %s174 = sadd.s32 %s164, 2
        %s175 = smul.u32 %s174, 2
        %s176 = sld [smem:[#allocation3 + %s175]]
        %p177 = scmp.gt.s32.totalorder %s176, 0
        %s178 = scalar_select %p177, %s176, 0
        %p179 = scmp.lt.s32.totalorder %s178, 49
        %s180 = scalar_select %p179, %s178, 49
        %s181 = scalar_lea.vmem %s1, %s180
        %v182 = vld [vmem:[%s181] sm:$0x1]
        %s183 = sadd.s32 %s164, 3
        %s184 = smul.u32 %s183, 2
        %s185 = sld [smem:[#allocation3 + %s184]]
        %p186 = scmp.gt.s32.totalorder %s185, 0
        %s187 = scalar_select %p186, %s185, 0
        %p188 = scmp.lt.s32.totalorder %s187, 49
        %s189 = scalar_select %p188, %s187, 49
        %s190 = scalar_lea.vmem %s1, %s189
        %v191 = vld [vmem:[%s190] sm:$0x1]
        %s192 = sadd.s32 %s164, 4
        %s193 = smul.u32 %s192, 2
        %s194 = sld [smem:[#allocation3 + %s193]]
        %p195 = scmp.gt.s32.totalorder %s194, 0
        %s196 = scalar_select %p195, %s194, 0
        %p197 = scmp.lt.s32.totalorder %s196, 49
        %s198 = scalar_select %p197, %s196, 49
        %s199 = scalar_lea.vmem %s1, %s198
        %v200 = vld [vmem:[%s199] sm:$0x1]
        %s201 = sadd.s32 %s164, 5
        %s202 = smul.u32 %s201, 2
        %s203 = sld [smem:[#allocation3 + %s202]]
        %p204 = scmp.gt.s32.totalorder %s203, 0
        %s205 = scalar_select %p204, %s203, 0
        %p206 = scmp.lt.s32.totalorder %s205, 49
        %s207 = scalar_select %p206, %s205, 49
        %s208 = scalar_lea.vmem %s1, %s207
        %v209 = vld [vmem:[%s208] sm:$0x1]
        %s210 = sadd.s32 %s164, 6
        %s211 = smul.u32 %s210, 2
        %s212 = sld [smem:[#allocation3 + %s211]]
        %p213 = scmp.gt.s32.totalorder %s212, 0
        %s214 = scalar_select %p213, %s212, 0
        %p215 = scmp.lt.s32.totalorder %s214, 49
        %s216 = scalar_select %p215, %s214, 49
        %s217 = scalar_lea.vmem %s1, %s216
        %v218 = vld [vmem:[%s217] sm:$0x1]
        %s219 = sadd.s32 %s164, 7
        %s220 = smul.u32 %s219, 2
        %s221 = sld [smem:[#allocation3 + %s220]]
        %p222 = scmp.gt.s32.totalorder %s221, 0
        %s223 = scalar_select %p222, %s221, 0
        %p224 = scmp.lt.s32.totalorder %s223, 49
        %s225 = scalar_select %p224, %s223, 49
        %s226 = scalar_lea.vmem %s1, %s225
        %v227 = vld [vmem:[%s226] sm:$0x1]
        %v229 = vrot.slane %v173, 7
        %v232 = vrot.slane %v182, 6
        %v235 = vrot.slane %v191, 5
        %v238 = vrot.slane %v200, 4
        %v241 = vrot.slane %v209, 3
        %v244 = vrot.slane %v218, 2
        %v247 = vrot.slane %v227, 1
        %vm249 = vcmask 1040384
        %v250 = vsel %vm249, %v163, %v229
        %vm251 = vcmask 1041408
        %v252 = vsel %vm251, %v250, %v232
        %vm253 = vcmask 1042432
        %v254 = vsel %vm253, %v252, %v235
        %vm255 = vcmask 1043456
        %v256 = vsel %vm255, %v254, %v238
        %vm257 = vcmask 1044480
        %v258 = vsel %vm257, %v256, %v241
        %vm259 = vcmask 1045504
        %v260 = vsel %vm259, %v258, %v244
        %vm261 = vcmask 1046528
        %v262 = vsel %vm261, %v260, %v247
        %v263 = vld [vmem:[%s2] sm:$0xff]
        %v264 = vld [vmem:[%s2 + $0x8] sm:$0x3]
        %s265 = sadd.s32 %s156, 1
        %s266 = sld [smem:[#allocation3 + %s265]]
        %p267 = scmp.gt.s32.totalorder %s266, 0
        %s268 = scalar_select %p267, %s266, 0
        %p269 = scmp.lt.s32.totalorder %s268, 49
        %s270 = scalar_select %p269, %s268, 49
        %s271 = scalar_lea.vmem %s1, %s270
        %v272 = vld [vmem:[%s271] sm:$0x1]
        %s273 = sadd.s32 %s166, 1
        %s274 = sld [smem:[#allocation3 + %s273]]
        %p275 = scmp.gt.s32.totalorder %s274, 0
        %s276 = scalar_select %p275, %s274, 0
        %p277 = scmp.lt.s32.totalorder %s276, 49
        %s278 = scalar_select %p277, %s276, 49
        %s279 = scalar_lea.vmem %s1, %s278
        %v280 = vld [vmem:[%s279] sm:$0x1]
        %s281 = sadd.s32 %s175, 1
        %s282 = sld [smem:[#allocation3 + %s281]]
        %p283 = scmp.gt.s32.totalorder %s282, 0
        %s284 = scalar_select %p283, %s282, 0
        %p285 = scmp.lt.s32.totalorder %s284, 49
        %s286 = scalar_select %p285, %s284, 49
        %s287 = scalar_lea.vmem %s1, %s286
        %v288 = vld [vmem:[%s287] sm:$0x1]
        %s289 = sadd.s32 %s184, 1
        %s290 = sld [smem:[#allocation3 + %s289]]
        %p291 = scmp.gt.s32.totalorder %s290, 0
        %s292 = scalar_select %p291, %s290, 0
        %p293 = scmp.lt.s32.totalorder %s292, 49
        %s294 = scalar_select %p293, %s292, 49
        %s295 = scalar_lea.vmem %s1, %s294
        %v296 = vld [vmem:[%s295] sm:$0x1]
        %s297 = sadd.s32 %s193, 1
        %s298 = sld [smem:[#allocation3 + %s297]]
        %p299 = scmp.gt.s32.totalorder %s298, 0
        %s300 = scalar_select %p299, %s298, 0
        %p301 = scmp.lt.s32.totalorder %s300, 49
        %s302 = scalar_select %p301, %s300, 49
        %s303 = scalar_lea.vmem %s1, %s302
        %v304 = vld [vmem:[%s303] sm:$0x1]
        %s305 = sadd.s32 %s202, 1
        %s306 = sld [smem:[#allocation3 + %s305]]
        %p307 = scmp.gt.s32.totalorder %s306, 0
        %s308 = scalar_select %p307, %s306, 0
        %p309 = scmp.lt.s32.totalorder %s308, 49
        %s310 = scalar_select %p309, %s308, 49
        %s311 = scalar_lea.vmem %s1, %s310
        %v312 = vld [vmem:[%s311] sm:$0x1]
        %s313 = sadd.s32 %s211, 1
        %s314 = sld [smem:[#allocation3 + %s313]]
        %p315 = scmp.gt.s32.totalorder %s314, 0
        %s316 = scalar_select %p315, %s314, 0
        %p317 = scmp.lt.s32.totalorder %s316, 49
        %s318 = scalar_select %p317, %s316, 49
        %s319 = scalar_lea.vmem %s1, %s318
        %v320 = vld [vmem:[%s319] sm:$0x1]
        %s321 = sadd.s32 %s220, 1
        %s322 = sld [smem:[#allocation3 + %s321]]
        %p323 = scmp.gt.s32.totalorder %s322, 0
        %s324 = scalar_select %p323, %s322, 0
        %p325 = scmp.lt.s32.totalorder %s324, 49
        %s326 = scalar_select %p325, %s324, 49
        %s327 = scalar_lea.vmem %s1, %s326
        %v328 = vld [vmem:[%s327] sm:$0x1]
        %v330 = vrot.slane %v280, 7
        %v333 = vrot.slane %v288, 6
        %v336 = vrot.slane %v296, 5
        %v339 = vrot.slane %v304, 4
        %v342 = vrot.slane %v312, 3
        %v345 = vrot.slane %v320, 2
        %v348 = vrot.slane %v328, 1
        %v350 = vsel %vm249, %v272, %v330
        %v351 = vsel %vm251, %v350, %v333
        %v352 = vsel %vm253, %v351, %v336
        %v353 = vsel %vm255, %v352, %v339
        %v354 = vsel %vm257, %v353, %v342
        %v355 = vsel %vm259, %v354, %v345
        %v356 = vsel %vm261, %v355, %v348
        %s357 = scalar_lea.vmem %s2, 16
        %v358 = vld [vmem:[%s357] sm:$0xff]
        %v359 = vld [vmem:[%s357 + $0x8] sm:$0x3]
        %vm360 = vcmask 80896
        %v362 = vsel %vm360, %v356, 0
        %v365 = vsel %vm251, %v359, 0
        %367 = vmatprep.subr.mxu0 0.0
        %368 = vmatpush1.msra.mxu0 %v358
        %369 = vmatprep.subr.mxu0 0.0
        %370 = vmatpush1.msra.mxu0 %v365
        %371 = vmatprep.subr.mxu0 0.0
        %372 = vmatpush1.msra.mxu0 0.0
        %373 = vmatprep.subr.mxu0 0.0
        %374 = vmatpush1.msra.mxu0 0.0
        %375 = vmatprep.subr.mxu0 0.0
        %376 = vmatpush1.msra.mxu0 0.0
        %377 = vmatprep.subr.mxu0 0.0
        %378 = vmatpush1.msra.mxu0 0.0
        %379 = vmatprep.subr.mxu0 0.0
        %380 = vmatpush1.msra.mxu0 0.0
        %381 = vmatprep.subr.mxu0 0.0
        %382 = vmatpush1.msra.mxu0 0.0
        %383 = vmatprep.subr.mxu0 0.0
        %384 = vmatpush1.msra.mxu0 0.0
        %385 = vmatprep.subr.mxu0 0.0
        %386 = vmatpush1.msra.mxu0 0.0
        %387 = vmatprep.subr.mxu0 0.0
        %388 = vmatpush1.msra.mxu0 0.0
        %389 = vmatprep.subr.mxu0 0.0
        %390 = vmatpush1.msra.mxu0 0.0
        %391 = vmatprep.subr.mxu0 0.0
        %392 = vmatpush1.msra.mxu0 0.0
        %393 = vmatprep.subr.mxu0 0.0
        %394 = vmatpush1.msra.mxu0 0.0
        %395 = vmatprep.subr.mxu0 0.0
        %396 = vmatpush1.msra.mxu0 0.0
        %397 = vmatprep.subr.mxu0 0.0
        %398 = vmatpush1.msra.mxu0 0.0
        %399 = vmatprep.subr.mxu0 0.0
        %400 = vmatpush1.msra.mxu0 0.0
        %401 = vmatprep.subr.mxu0 0.0
        %402 = vmatpush1.msra.mxu0 0.0
        %403 = vmatprep.subr.mxu0 0.0
        %404 = vmatpush1.msra.mxu0 0.0
        %405 = vmatprep.subr.mxu0 0.0
        %406 = vmatpush1.msra.mxu0 0.0
        %407 = vmatprep.subr.mxu0 0.0
        %408 = vmatpush1.msra.mxu0 0.0
        %409 = vmatprep.subr.mxu0 0.0
        %410 = vmatpush1.msra.mxu0 0.0
        %411 = vmatprep.subr.mxu0 0.0
        %412 = vmatpush1.msra.mxu0 0.0
        %413 = vmatprep.subr.mxu0 0.0
        %414 = vmatpush1.msra.mxu0 0.0
        %415 = vmatprep.subr.mxu0 0.0
        %416 = vmatpush1.msra.mxu0 0.0
        %417 = vmatprep.subr.mxu0 0.0
        %418 = vmatpush1.msra.mxu0 0.0
        %419 = vmatprep.subr.mxu0 0.0
        %420 = vmatpush1.msra.mxu0 0.0
        %421 = vmatprep.subr.mxu0 0.0
        %422 = vmatpush1.msra.mxu0 0.0
        %423 = vmatprep.subr.mxu0 0.0
        %424 = vmatpush1.msra.mxu0 0.0
        %425 = vmatprep.subr.mxu0 0.0
        %426 = vmatpush1.msra.mxu0 0.0
        %427 = vmatprep.subr.mxu0 0.0
        %428 = vmatpush1.msra.mxu0 0.0
        %429 = vmatprep.subr.mxu0 0.0
        %430 = vmatpush1.msra.mxu0 0.0
        %431 = vmatprep.mubr.f32.mxu0 0.0
        %432 = vmatmul.mubr.f32.gmra.mrb[0].mxu0 %v362
        %v433 = vpop.f32.mrb[0].mxu0
        %v434 = vadd.f32 0.0, %v433
        %v435 = vpop.f32.mrb[0].mxu0
        %436 = vdwg.mxu0
        %v438 = vsel %vm360, %v262, 0
        %v441 = vsel %vm251, %v264, 0
        %443 = vmatprep.subr.mxu0 0.0
        %444 = vmatpush1.msra.mxu0 %v263
        %445 = vmatprep.subr.mxu0 0.0
        %446 = vmatpush1.msra.mxu0 %v441
        %447 = vmatprep.subr.mxu0 0.0
        %448 = vmatpush1.msra.mxu0 0.0
        %449 = vmatprep.subr.mxu0 0.0
        %450 = vmatpush1.msra.mxu0 0.0
        %451 = vmatprep.subr.mxu0 0.0
        %452 = vmatpush1.msra.mxu0 0.0
        %453 = vmatprep.subr.mxu0 0.0
        %454 = vmatpush1.msra.mxu0 0.0
        %455 = vmatprep.subr.mxu0 0.0
        %456 = vmatpush1.msra.mxu0 0.0
        %457 = vmatprep.subr.mxu0 0.0
        %458 = vmatpush1.msra.mxu0 0.0
        %459 = vmatprep.subr.mxu0 0.0
        %460 = vmatpush1.msra.mxu0 0.0
        %461 = vmatprep.subr.mxu0 0.0
        %462 = vmatpush1.msra.mxu0 0.0
        %463 = vmatprep.subr.mxu0 0.0
        %464 = vmatpush1.msra.mxu0 0.0
        %465 = vmatprep.subr.mxu0 0.0
        %466 = vmatpush1.msra.mxu0 0.0
        %467 = vmatprep.subr.mxu0 0.0
        %468 = vmatpush1.msra.mxu0 0.0
        %469 = vmatprep.subr.mxu0 0.0
        %470 = vmatpush1.msra.mxu0 0.0
        %471 = vmatprep.subr.mxu0 0.0
        %472 = vmatpush1.msra.mxu0 0.0
        %473 = vmatprep.subr.mxu0 0.0
        %474 = vmatpush1.msra.mxu0 0.0
        %475 = vmatprep.subr.mxu0 0.0
        %476 = vmatpush1.msra.mxu0 0.0
        %477 = vmatprep.subr.mxu0 0.0
        %478 = vmatpush1.msra.mxu0 0.0
        %479 = vmatprep.subr.mxu0 0.0
        %480 = vmatpush1.msra.mxu0 0.0
        %481 = vmatprep.subr.mxu0 0.0
        %482 = vmatpush1.msra.mxu0 0.0
        %483 = vmatprep.subr.mxu0 0.0
        %484 = vmatpush1.msra.mxu0 0.0
        %485 = vmatprep.subr.mxu0 0.0
        %486 = vmatpush1.msra.mxu0 0.0
        %487 = vmatprep.subr.mxu0 0.0
        %488 = vmatpush1.msra.mxu0 0.0
        %489 = vmatprep.subr.mxu0 0.0
        %490 = vmatpush1.msra.mxu0 0.0
        %491 = vmatprep.subr.mxu0 0.0
        %492 = vmatpush1.msra.mxu0 0.0
        %493 = vmatprep.subr.mxu0 0.0
        %494 = vmatpush1.msra.mxu0 0.0
        %495 = vmatprep.subr.mxu0 0.0
        %496 = vmatpush1.msra.mxu0 0.0
        %497 = vmatprep.subr.mxu0 0.0
        %498 = vmatpush1.msra.mxu0 0.0
        %499 = vmatprep.subr.mxu0 0.0
        %500 = vmatpush1.msra.mxu0 0.0
        %501 = vmatprep.subr.mxu0 0.0
        %502 = vmatpush1.msra.mxu0 0.0
        %503 = vmatprep.subr.mxu0 0.0
        %504 = vmatpush1.msra.mxu0 0.0
        %505 = vmatprep.subr.mxu0 0.0
        %506 = vmatpush1.msra.mxu0 0.0
        %507 = vmatprep.mubr.f32.mxu0 0.0
        %508 = vmatmul.mubr.f32.gmra.mrb[0].mxu0 %v438
        %v509 = vpop.f32.mrb[0].mxu0
        %v510 = vadd.f32 %v434, %v509
        %v511 = vpop.f32.mrb[0].mxu0
        %512 = vdwg.mxu0
        %v513 = vld [vmem:[%s3] sm:$0x1]
        %v515 = vlaneseq
        %v516 = vshrl.u32 %v515, 7
        %v517 = vsub.s32 0, %v516
        %v518 = vrot.slane %v513, %v517
        %v520 = vadd.f32 %v510, %v518
        %v521 = vmax.f32 %v520, 0.0
        %522 = vmax.xlane.f32.xlu0 %v521
        %v523 = vpop.xlane.xlu0 %522
        %v524 = vsub.f32 %v521, %v523
        %v525 = vmul.f32 %v524, 1.442695
        %v526 = vpow.pop %v525
        %527 = vadd.xlane.f32.xlu0 %v526
        %v528 = vpop.xlane.xlu0 %527
        %v529 = vlog2.pop %v528
        %v530 = vmul.f32 %v529, 0.6931472
        %v531 = vsub.f32 %v524, %v530
        %532 = vst [vmem:[%s155] sm:$0xff] %v531
        %s533 = sand.u32 %s95, 1
        %s534 = scalar_lea.sflag [#allocation5], %s533
        %s535 = sand.u32 %s95, 1
        %s536 = smul.addr %s535, 8
        %s537 = scalar_lea.vmem [#allocation4], %s536
        // Predicated region
        $region33: #{tpu_custom_call.1} parent=31 // pred_check
          %p538 = pneg %p105
        $region34: #{tpu_custom_call.1} parent=31 // pred_check_branch
          %540 = sbr.rel (%p538) target = $region36
        $region35: #{tpu_custom_call.1} parent=31 // pred_region
          %s542 = ssub.s32 128, 128
          %543 = vsyncadd %s534, %s542
          %s544 = smul.addr %s24, 128
          %s545 = scalar_lea.hbm %s4, %s544
          %s547 = sshll.u32 %s537, 4
          %s548 = int_to_ptr.vmem [resolvable:$true] %s547
          %550 = dma.vmem_to_hbm [thread:$0]  %s548, 128, %s545, %s534
        $region36: #{tpu_custom_call.1} parent=31 // pred_fallthru
          _
      $region32: #{tpu_custom_call.1} parent=5 // pred_fallthru
        _
      %p551 = scmp.le.s32.totalorder 2, %s19
      // Predicated region
      $region37: #{tpu_custom_call.1} parent=5 // pred_check
        %p552 = pneg %p551
      $region38: #{tpu_custom_call.1} parent=5 // pred_check_branch
        %554 = sbr.rel (%p552) target = $region40
      $region39: #{tpu_custom_call.1} parent=5 // pred_region
        %s555 = ssub.s32 %s19, 2
        // Predicated region
        $region41: #{tpu_custom_call.1} parent=39 // pred_check
          %p556 = pneg %p111
        $region42: #{tpu_custom_call.1} parent=39 // pred_check_branch
          %558 = sbr.rel (%p556) target = $region44
        $region43: #{tpu_custom_call.1} parent=39 // pred_region
          %s559 = sand.u32 %s96, 1
          %s560 = scalar_lea.sflag [#allocation5], %s559
          %s561 = sand.u32 %s96, 1
          %s562 = smul.addr %s561, 8
          %s563 = scalar_lea.vmem [#allocation4], %s562
          %564 = dma.done %s560, 128
        $region44: #{tpu_custom_call.1} parent=39 // pred_fallthru
          _
      $region40: #{tpu_custom_call.1} parent=5 // pred_fallthru
        _
    $region6: #{tpu_custom_call.1} parent=1 // loop_footer
      %s23 = sadd.s32 1, %s19
    $region7: #{tpu_custom_call.1} parent=1 // loop_footer_branch
      %18 = sbr.rel target = $region3
    $region8: #{tpu_custom_call.1} parent=1 // loop_exit
      _
    %565 = vsyncpa [#allocation5], 1
    %s566 = scalar_lea.sflag [#allocation5], 1
    %567 = vsyncpa %s566, 1

</llo_original>
